<compile_context>
chip_gen: v7x
topology: tpu7x:2x2x1
jax: 0.10.0
libtpu: 0.0.40
codegen_flags: <defaults>
</compile_context>

<pallas_src>
import functools

import jax
import jax.numpy as jnp
from jax.experimental import pallas as pl
from jax.experimental.pallas import tpu as pltpu

BN_EPS = 1e-5   # PyTorch nn.BatchNorm1d default eps
LANE = 128      # TPU lane width
SUBLANE = 8     # TPU sublane width


def _round_up(n, m):
    return (n + m - 1) // m * m


def _fused_bn(h, gamma, beta, inv_n, true_batch):
    """Training-mode BatchNorm1d, single reduction pass, folded affine."""
    if h.shape[0] != true_batch:
        # Padded batch rows must not pollute the statistics.
        rows = jax.lax.broadcasted_iota(jnp.int32, h.shape, 0)
        hm = jnp.where(rows < true_batch, h, 0.0)
    else:
        hm = h
    s = jnp.sum(hm, axis=0, keepdims=True)            # XLU reduce
    ss = jnp.sum(hm * hm, axis=0, keepdims=True)      # XLU reduce (same pass)
    mean = s * inv_n
    var = ss * inv_n - mean * mean                    # biased variance
    scale = gamma * jax.lax.rsqrt(var + BN_EPS)       # EUP rsqrt
    shift = beta - mean * scale
    return h * scale + shift


def _generator_kernel(x_ref, nz_ref, w1x_ref, w1n_ref, w2_ref, w3_ref, w4_ref,
                      vec_ref, out_ref, *, hidden, true_batch):
    # Packed per-layer vectors (f32): rows = b1,g1,be1,b2,g2,be2,b3,b4_padded.
    vec = vec_ref[...]
    b1, g1, be1 = vec[0:1, :hidden], vec[1:2, :hidden], vec[2:3, :hidden]
    b2, g2, be2 = vec[3:4, :hidden], vec[4:5, :hidden], vec[5:6, :hidden]
    b3 = vec[6:7, :hidden]
    b4 = vec[7:8, :]                                   # (1, out_pad)

    inv_n = jnp.float32(1.0 / true_batch)
    x = x_ref[...].astype(jnp.bfloat16)
    nz = nz_ref[...].astype(jnp.bfloat16)

    # --- Linear(input+noise -> hidden) + ReLU + BatchNorm1d (training mode) ---
    h = (jnp.dot(x, w1x_ref[...], preferred_element_type=jnp.float32)
         + jnp.dot(nz, w1n_ref[...], preferred_element_type=jnp.float32)
         + b1)
    h = jnp.maximum(h, 0.0)
    h = _fused_bn(h, g1, be1, inv_n, true_batch)

    # --- Linear(hidden -> hidden) + ReLU + BatchNorm1d (training mode) ---
    h = jnp.dot(h.astype(jnp.bfloat16), w2_ref[...],
                preferred_element_type=jnp.float32) + b2
    h = jnp.maximum(h, 0.0)
    h = _fused_bn(h, g2, be2, inv_n, true_batch)

    # --- Linear(hidden -> hidden) + ReLU ---
    h = jnp.dot(h.astype(jnp.bfloat16), w3_ref[...],
                preferred_element_type=jnp.float32) + b3
    h = jnp.maximum(h, 0.0)

    # --- Linear(hidden -> output_size_padded) --- (lane-dense store)
    y = jnp.dot(h.astype(jnp.bfloat16), w4_ref[...],
                preferred_element_type=jnp.float32) + b4
    out_ref[...] = y.astype(out_ref.dtype)


def init_generator_params(key, input_size, output_size, noise_dim=3, hidden_dim=128):
    """Deterministic synthetic parameter init (weights stored as (in, out), f32)."""
    d_in = input_size + noise_dim
    keys = jax.random.split(key, 8)

    def lin(k, fan_in, fan_out):
        kw, kb = jax.random.split(k)
        bound = 1.0 / jnp.sqrt(fan_in)
        w = jax.random.uniform(kw, (fan_in, fan_out), jnp.float32, -bound, bound)
        b = jax.random.uniform(kb, (1, fan_out), jnp.float32, -bound, bound)
        return w, b

    w1, b1 = lin(keys[0], d_in, hidden_dim)
    w2, b2 = lin(keys[1], hidden_dim, hidden_dim)
    w3, b3 = lin(keys[2], hidden_dim, hidden_dim)
    w4, b4 = lin(keys[3], hidden_dim, output_size)
    # BatchNorm affine params (PyTorch default: gamma=1, beta=0); perturbed so
    # the normalization path is exercised.
    g1 = 1.0 + 0.1 * jax.random.normal(keys[4], (1, hidden_dim), jnp.float32)
    be1 = 0.1 * jax.random.normal(keys[5], (1, hidden_dim), jnp.float32)
    g2 = 1.0 + 0.1 * jax.random.normal(keys[6], (1, hidden_dim), jnp.float32)
    be2 = 0.1 * jax.random.normal(keys[7], (1, hidden_dim), jnp.float32)
    return dict(w1=w1, b1=b1, g1=g1, be1=be1,
                w2=w2, b2=b2, g2=g2, be2=be2,
                w3=w3, b3=b3, w4=w4, b4=b4)


def prepare_generator_params(params, input_size):
    """One-time layout prep: split w1, cast weights to bf16, pad w4/b4 columns
    to a multiple of 128, and pack the 8 small vectors into one (8, L) array."""
    hidden = params["w1"].shape[1]
    out_size = params["w4"].shape[1]
    out_pad = _round_up(out_size, LANE)
    lanes = max(_round_up(hidden, LANE), out_pad)

    w1 = params["w1"].astype(jnp.bfloat16)
    w1x = w1[:input_size]
    w1n = w1[input_size:]
    w2 = params["w2"].astype(jnp.bfloat16)
    w3 = params["w3"].astype(jnp.bfloat16)
    w4 = jnp.zeros((hidden, out_pad), jnp.bfloat16)
    w4 = w4.at[:, :out_size].set(params["w4"].astype(jnp.bfloat16))

    def row(v, width):
        r = jnp.zeros((1, lanes), jnp.float32)
        return r.at[:, :width].set(v.reshape(1, -1).astype(jnp.float32))

    vec = jnp.concatenate([
        row(params["b1"], hidden), row(params["g1"], hidden), row(params["be1"], hidden),
        row(params["b2"], hidden), row(params["g2"], hidden), row(params["be2"], hidden),
        row(params["b3"], hidden), row(params["b4"], out_size)], axis=0)

    return dict(w1x=w1x, w1n=w1n, w2=w2, w3=w3, w4=w4, vec=vec,
                hidden=hidden, out_size=out_size, out_pad=out_pad)


def generator_forward(x, noise, prep):
    batch = x.shape[0]
    batch_pad = _round_up(batch, SUBLANE)
    x = x.astype(jnp.float32)
    noise = noise.astype(jnp.float32)
    if batch_pad != batch:
        x = jnp.pad(x, ((0, batch_pad - batch), (0, 0)))
        noise = jnp.pad(noise, ((0, batch_pad - batch), (0, 0)))

    kernel = functools.partial(_generator_kernel,
                               hidden=prep["hidden"], true_batch=batch)
    vmem = pl.BlockSpec(memory_space=pltpu.MemorySpace.VMEM)

    y_pad = pl.pallas_call(
        kernel,
        out_shape=jax.ShapeDtypeStruct((batch_pad, prep["out_pad"]), jnp.float32),
        in_specs=[vmem] * 8,
        out_specs=vmem,
    )(x, noise,
      prep["w1x"], prep["w1n"], prep["w2"], prep["w3"], prep["w4"], prep["vec"])

    return y_pad[:batch, :prep["out_size"]]


def generator_reference(x, noise, params):
    """Pure-JAX reference replicating the PyTorch forward (training-mode BN),
    with the same bf16 matmul operands / f32 accumulation as the kernel."""
    bf = jnp.bfloat16

    def mm(a, w):
        return jnp.dot(a.astype(bf), w.astype(bf), preferred_element_type=jnp.float32)

    h = jnp.concatenate([x, noise], axis=1).astype(jnp.float32)
    h = jnp.maximum(mm(h, params["w1"]) + params["b1"], 0.0)
    m = h.mean(0, keepdims=True)
    v = ((h - m) ** 2).mean(0, keepdims=True)
    h = (h - m) * jax.lax.rsqrt(v + BN_EPS) * params["g1"] + params["be1"]

    h = jnp.maximum(mm(h, params["w2"]) + params["b2"], 0.0)
    m = h.mean(0, keepdims=True)
    v = ((h - m) ** 2).mean(0, keepdims=True)
    h = (h - m) * jax.lax.rsqrt(v + BN_EPS) * params["g2"] + params["be2"]

    h = jnp.maximum(mm(h, params["w3"]) + params["b3"], 0.0)
    return mm(h, params["w4"]) + params["b4"]


if __name__ == "__main__":
    # Small shapes consistent with the module's forward (hidden_dim = module default).
    batch = 16
    input_size = 16
    output_size = 8
    noise_dim = 3
    hidden_dim = 128

    key = jax.random.PRNGKey(0)
    k_params, k_x, k_noise = jax.random.split(key, 3)

    params = init_generator_params(k_params, input_size, output_size,
                                   noise_dim=noise_dim, hidden_dim=hidden_dim)
    prep = prepare_generator_params(params, input_size)

    x = jax.random.normal(k_x, (batch, input_size), jnp.float32)
    noise = jax.random.normal(k_noise, (batch, noise_dim), jnp.float32)

    y = generator_forward(x, noise, prep)
    y = jax.block_until_ready(y)

    y_ref = generator_reference(x, noise, params)
    assert y.shape == (batch, output_size)
    assert jnp.allclose(y, y_ref, atol=1e-2, rtol=1e-2), "mismatch vs JAX reference"

    print("KERNEL_OK")
</pallas_src>

<mosaic_0001>
module attributes {stable_mosaic.version = 11 : i64} {
  func.func @_generator_kernel(%arg0: memref<16x16xf32, #tpu.memory_space<vmem>>, %arg1: memref<16x3xf32, #tpu.memory_space<vmem>>, %arg2: memref<16x128xbf16, #tpu.memory_space<vmem>>, %arg3: memref<3x128xbf16, #tpu.memory_space<vmem>>, %arg4: memref<128x128xbf16, #tpu.memory_space<vmem>>, %arg5: memref<128x128xbf16, #tpu.memory_space<vmem>>, %arg6: memref<128x128xbf16, #tpu.memory_space<vmem>>, %arg7: memref<8x128xf32, #tpu.memory_space<vmem>>, %arg8: memref<16x128xf32, #tpu.memory_space<vmem>>) attributes {dimension_semantics = [], scalar_prefetch = 0 : i64, scratch_operands = 0 : i64, tpu.core_type = #tpu.core_type<tc>} {
    %c0 = arith.constant 0 : index
    %c0_0 = arith.constant 0 : index
    %0 = vector.load %arg7[%c0, %c0_0] : memref<8x128xf32, #tpu.memory_space<vmem>>, vector<8x128xf32>
    %1 = vector.extract_strided_slice %0 {offsets = [0, 0], sizes = [1, 128], strides = [1, 1]} : vector<8x128xf32> to vector<1x128xf32>
    %2 = vector.extract_strided_slice %0 {offsets = [1, 0], sizes = [1, 128], strides = [1, 1]} : vector<8x128xf32> to vector<1x128xf32>
    %3 = vector.extract_strided_slice %0 {offsets = [2, 0], sizes = [1, 128], strides = [1, 1]} : vector<8x128xf32> to vector<1x128xf32>
    %4 = vector.extract_strided_slice %0 {offsets = [3, 0], sizes = [1, 128], strides = [1, 1]} : vector<8x128xf32> to vector<1x128xf32>
    %5 = vector.extract_strided_slice %0 {offsets = [4, 0], sizes = [1, 128], strides = [1, 1]} : vector<8x128xf32> to vector<1x128xf32>
    %6 = vector.extract_strided_slice %0 {offsets = [5, 0], sizes = [1, 128], strides = [1, 1]} : vector<8x128xf32> to vector<1x128xf32>
    %7 = vector.extract_strided_slice %0 {offsets = [6, 0], sizes = [1, 128], strides = [1, 1]} : vector<8x128xf32> to vector<1x128xf32>
    %8 = vector.extract_strided_slice %0 {offsets = [7, 0], sizes = [1, 128], strides = [1, 1]} : vector<8x128xf32> to vector<1x128xf32>
    %c0_1 = arith.constant 0 : index
    %c0_2 = arith.constant 0 : index
    %9 = vector.load %arg0[%c0_1, %c0_2] : memref<16x16xf32, #tpu.memory_space<vmem>>, vector<16x16xf32>
    %10 = arith.truncf %9 : vector<16x16xf32> to vector<16x16xbf16>
    %c0_3 = arith.constant 0 : index
    %c0_4 = arith.constant 0 : index
    %11 = vector.load %arg1[%c0_3, %c0_4] : memref<16x3xf32, #tpu.memory_space<vmem>>, vector<16x3xf32>
    %12 = arith.truncf %11 : vector<16x3xf32> to vector<16x3xbf16>
    %c0_5 = arith.constant 0 : index
    %c0_6 = arith.constant 0 : index
    %13 = vector.load %arg2[%c0_5, %c0_6] : memref<16x128xbf16, #tpu.memory_space<vmem>>, vector<16x128xbf16>
    %cst = arith.constant dense<0.000000e+00> : vector<16x128xf32>
    %14 = tpu.matmul %10, %13, %cst {dimension_numbers = #tpu.dot_dimension_numbers<[1], [0], [0], [1], [0, 0, 1, 1], [], []>} : vector<16x16xbf16>, vector<16x128xbf16>, vector<16x128xf32> -> vector<16x128xf32>
    %c0_7 = arith.constant 0 : index
    %c0_8 = arith.constant 0 : index
    %15 = vector.load %arg3[%c0_7, %c0_8] : memref<3x128xbf16, #tpu.memory_space<vmem>>, vector<3x128xbf16>
    %cst_9 = arith.constant dense<0.000000e+00> : vector<16x128xf32>
    %16 = tpu.matmul %12, %15, %cst_9 {dimension_numbers = #tpu.dot_dimension_numbers<[1], [0], [0], [1], [0, 0, 1, 1], [], []>} : vector<16x3xbf16>, vector<3x128xbf16>, vector<16x128xf32> -> vector<16x128xf32>
    %17 = arith.addf %14, %16 : vector<16x128xf32>
    %18 = vector.broadcast %1 : vector<1x128xf32> to vector<16x128xf32>
    %19 = arith.addf %17, %18 : vector<16x128xf32>
    %cst_10 = arith.constant 0.000000e+00 : f32
    %20 = vector.broadcast %cst_10 : f32 to vector<16x128xf32>
    %21 = arith.maximumf %19, %20 : vector<16x128xf32>
    %cst_11 = arith.constant dense<0.000000e+00> : vector<128xf32>
    %22 = vector.multi_reduction <add>, %21, %cst_11 [0] : vector<16x128xf32> to vector<128xf32>
    %23 = vector.shape_cast %22 : vector<128xf32> to vector<1x128xf32>
    %24 = arith.mulf %21, %21 : vector<16x128xf32>
    %cst_12 = arith.constant dense<0.000000e+00> : vector<128xf32>
    %25 = vector.multi_reduction <add>, %24, %cst_12 [0] : vector<16x128xf32> to vector<128xf32>
    %26 = vector.shape_cast %25 : vector<128xf32> to vector<1x128xf32>
    %cst_13 = arith.constant 6.250000e-02 : f32
    %27 = vector.broadcast %cst_13 : f32 to vector<1x128xf32>
    %28 = arith.mulf %23, %27 : vector<1x128xf32>
    %cst_14 = arith.constant 6.250000e-02 : f32
    %29 = vector.broadcast %cst_14 : f32 to vector<1x128xf32>
    %30 = arith.mulf %26, %29 : vector<1x128xf32>
    %31 = arith.mulf %28, %28 : vector<1x128xf32>
    %32 = arith.subf %30, %31 : vector<1x128xf32>
    %cst_15 = arith.constant 9.99999974E-6 : f32
    %33 = vector.broadcast %cst_15 : f32 to vector<1x128xf32>
    %34 = arith.addf %32, %33 : vector<1x128xf32>
    %35 = math.rsqrt %34 : vector<1x128xf32>
    %36 = arith.mulf %2, %35 : vector<1x128xf32>
    %37 = arith.mulf %28, %36 : vector<1x128xf32>
    %38 = arith.subf %3, %37 : vector<1x128xf32>
    %39 = vector.broadcast %36 : vector<1x128xf32> to vector<16x128xf32>
    %40 = arith.mulf %21, %39 : vector<16x128xf32>
    %41 = vector.broadcast %38 : vector<1x128xf32> to vector<16x128xf32>
    %42 = arith.addf %40, %41 : vector<16x128xf32>
    %43 = arith.truncf %42 : vector<16x128xf32> to vector<16x128xbf16>
    %c0_16 = arith.constant 0 : index
    %c0_17 = arith.constant 0 : index
    %44 = vector.load %arg4[%c0_16, %c0_17] : memref<128x128xbf16, #tpu.memory_space<vmem>>, vector<128x128xbf16>
    %cst_18 = arith.constant dense<0.000000e+00> : vector<16x128xf32>
    %45 = tpu.matmul %43, %44, %cst_18 {dimension_numbers = #tpu.dot_dimension_numbers<[1], [0], [0], [1], [0, 0, 1, 1], [], []>} : vector<16x128xbf16>, vector<128x128xbf16>, vector<16x128xf32> -> vector<16x128xf32>
    %46 = vector.broadcast %4 : vector<1x128xf32> to vector<16x128xf32>
    %47 = arith.addf %45, %46 : vector<16x128xf32>
    %cst_19 = arith.constant 0.000000e+00 : f32
    %48 = vector.broadcast %cst_19 : f32 to vector<16x128xf32>
    %49 = arith.maximumf %47, %48 : vector<16x128xf32>
    %cst_20 = arith.constant dense<0.000000e+00> : vector<128xf32>
    %50 = vector.multi_reduction <add>, %49, %cst_20 [0] : vector<16x128xf32> to vector<128xf32>
    %51 = vector.shape_cast %50 : vector<128xf32> to vector<1x128xf32>
    %52 = arith.mulf %49, %49 : vector<16x128xf32>
    %cst_21 = arith.constant dense<0.000000e+00> : vector<128xf32>
    %53 = vector.multi_reduction <add>, %52, %cst_21 [0] : vector<16x128xf32> to vector<128xf32>
    %54 = vector.shape_cast %53 : vector<128xf32> to vector<1x128xf32>
    %cst_22 = arith.constant 6.250000e-02 : f32
    %55 = vector.broadcast %cst_22 : f32 to vector<1x128xf32>
    %56 = arith.mulf %51, %55 : vector<1x128xf32>
    %cst_23 = arith.constant 6.250000e-02 : f32
    %57 = vector.broadcast %cst_23 : f32 to vector<1x128xf32>
    %58 = arith.mulf %54, %57 : vector<1x128xf32>
    %59 = arith.mulf %56, %56 : vector<1x128xf32>
    %60 = arith.subf %58, %59 : vector<1x128xf32>
    %cst_24 = arith.constant 9.99999974E-6 : f32
    %61 = vector.broadcast %cst_24 : f32 to vector<1x128xf32>
    %62 = arith.addf %60, %61 : vector<1x128xf32>
    %63 = math.rsqrt %62 : vector<1x128xf32>
    %64 = arith.mulf %5, %63 : vector<1x128xf32>
    %65 = arith.mulf %56, %64 : vector<1x128xf32>
    %66 = arith.subf %6, %65 : vector<1x128xf32>
    %67 = vector.broadcast %64 : vector<1x128xf32> to vector<16x128xf32>
    %68 = arith.mulf %49, %67 : vector<16x128xf32>
    %69 = vector.broadcast %66 : vector<1x128xf32> to vector<16x128xf32>
    %70 = arith.addf %68, %69 : vector<16x128xf32>
    %71 = arith.truncf %70 : vector<16x128xf32> to vector<16x128xbf16>
    %c0_25 = arith.constant 0 : index
    %c0_26 = arith.constant 0 : index
    %72 = vector.load %arg5[%c0_25, %c0_26] : memref<128x128xbf16, #tpu.memory_space<vmem>>, vector<128x128xbf16>
    %cst_27 = arith.constant dense<0.000000e+00> : vector<16x128xf32>
    %73 = tpu.matmul %71, %72, %cst_27 {dimension_numbers = #tpu.dot_dimension_numbers<[1], [0], [0], [1], [0, 0, 1, 1], [], []>} : vector<16x128xbf16>, vector<128x128xbf16>, vector<16x128xf32> -> vector<16x128xf32>
    %74 = vector.broadcast %7 : vector<1x128xf32> to vector<16x128xf32>
    %75 = arith.addf %73, %74 : vector<16x128xf32>
    %cst_28 = arith.constant 0.000000e+00 : f32
    %76 = vector.broadcast %cst_28 : f32 to vector<16x128xf32>
    %77 = arith.maximumf %75, %76 : vector<16x128xf32>
    %78 = arith.truncf %77 : vector<16x128xf32> to vector<16x128xbf16>
    %c0_29 = arith.constant 0 : index
    %c0_30 = arith.constant 0 : index
    %79 = vector.load %arg6[%c0_29, %c0_30] : memref<128x128xbf16, #tpu.memory_space<vmem>>, vector<128x128xbf16>
    %cst_31 = arith.constant dense<0.000000e+00> : vector<16x128xf32>
    %80 = tpu.matmul %78, %79, %cst_31 {dimension_numbers = #tpu.dot_dimension_numbers<[1], [0], [0], [1], [0, 0, 1, 1], [], []>} : vector<16x128xbf16>, vector<128x128xbf16>, vector<16x128xf32> -> vector<16x128xf32>
    %81 = vector.broadcast %8 : vector<1x128xf32> to vector<16x128xf32>
    %82 = arith.addf %80, %81 : vector<16x128xf32>
    %c0_32 = arith.constant 0 : index
    %c0_33 = arith.constant 0 : index
    %83 = vector.load %arg8[%c0_32, %c0_33] : memref<16x128xf32, #tpu.memory_space<vmem>>, vector<16x128xf32>
    tpu.vector_store %arg8[%c0_32, %c0_33], %82 {strides = array<i32>} : memref<16x128xf32, #tpu.memory_space<vmem>>, vector<16x128xf32>,
    return
  }
}

</mosaic_0001>

<llo_original>
// kernel: tpu_custom_call.1
$region0: #{tpu_custom_call.1}
  #allocation0 [shape = 'u32[]', space=smem, size = 0x4, offset = 0x4, fixed_abs, tag = 'smem constant byte address 0x4 - core index']
  #allocation1 [shape = 'u32[144,128]{1,0:T(1,128)}', space=vmem, size = 0x12000, scoped, tag = 'internal scratch']
  %s0 = inlined_call_operand.vmem [shape: f32[16,16], index: 0, kind: input, shape index: {}]
  %s1 = inlined_call_operand.vmem [shape: f32[16,3], index: 1, kind: input, shape index: {}]
  %s2 = inlined_call_operand.vmem [shape: bf16[16,128], index: 2, kind: input, shape index: {}]
  %s3 = inlined_call_operand.vmem [shape: bf16[3,128], index: 3, kind: input, shape index: {}]
  %s4 = inlined_call_operand.hbm [shape: bf16[128,128], index: 4, kind: input, shape index: {}]
  %s5 = inlined_call_operand.hbm [shape: bf16[128,128], index: 5, kind: input, shape index: {}]
  %s6 = inlined_call_operand.hbm [shape: bf16[128,128], index: 6, kind: input, shape index: {}]
  %s7 = inlined_call_operand.vmem [shape: f32[8,128], index: 7, kind: input, shape index: {}]
  %s8 = inlined_call_operand.hbm [shape: f32[16,128], index: 8, kind: output, shape index: {}]
  %s9 = sld [smem:[#allocation0]]
  $region54: #{tpu_custom_call.1} parent=0
    _
  %s11 = ssub.s32 1, %s9
  %s12 = scalar_select 0, %s11, %s9
  $region1: #{tpu_custom_call.1} parent=0
    #allocation2 [shape = 'u8[32768]{0}', space=vmem, size = 0x8000, scoped, tag = 'input window, operand 4, single buffered']
    #allocation3 [shape = 's32[1]{0}', space=sflag, size = 0x4, scoped, tag = 'scoped memory for tpu_custom_call.1']
    #allocation4 [shape = 's32[1]{0}', space=sflag, size = 0x4, scoped, tag = 'scoped memory for tpu_custom_call.1']
    #allocation5 [shape = 'u8[32768]{0}', space=vmem, size = 0x8000, scoped, tag = 'input window, operand 5, single buffered']
    #allocation6 [shape = 's32[1]{0}', space=sflag, size = 0x4, scoped, tag = 'scoped memory for tpu_custom_call.1']
    #allocation7 [shape = 'u8[32768]{0}', space=vmem, size = 0x8000, scoped, tag = 'input window, operand 6, single buffered']
    #allocation8 [shape = 'u8[8192]{0}', space=vmem, size = 0x2000, scoped, tag = 'output window, operand 0, single buffered']
    %13 = vsyncpa [#allocation3], 0
    %14 = vsyncpa [#allocation6], 0
    %15 = vsyncpa [#allocation4], 0
    // Predicated region
    $region2: #{tpu_custom_call.1} parent=1 // pred_check
      _
    $region3: #{tpu_custom_call.1} parent=1 // pred_check_branch
      %17 = sbr.rel (0) target = $region5
    $region4: #{tpu_custom_call.1} parent=1 // pred_region
      _
    $region5: #{tpu_custom_call.1} parent=1 // pred_fallthru
      _
    // Predicated region
    $region6: #{tpu_custom_call.1} parent=1 // pred_check
      _
    $region7: #{tpu_custom_call.1} parent=1 // pred_check_branch
      %19 = sbr.rel (0) target = $region9
    $region8: #{tpu_custom_call.1} parent=1 // pred_region
      _
    $region9: #{tpu_custom_call.1} parent=1 // pred_fallthru
      _
    // Predicated region
    $region10: #{tpu_custom_call.1} parent=1 // pred_check
      _
    $region11: #{tpu_custom_call.1} parent=1 // pred_check_branch
      %21 = sbr.rel (0) target = $region13
    $region12: #{tpu_custom_call.1} parent=1 // pred_region
      _
    $region13: #{tpu_custom_call.1} parent=1 // pred_fallthru
      _
    // Predicated region
    $region14: #{tpu_custom_call.1} parent=1 // pred_check
      _
    $region15: #{tpu_custom_call.1} parent=1 // pred_check_branch
      %23 = sbr.rel (0) target = $region17
    $region16: #{tpu_custom_call.1} parent=1 // pred_region
      _
    $region17: #{tpu_custom_call.1} parent=1 // pred_fallthru
      _
    // Predicated region
    $region18: #{tpu_custom_call.1} parent=1 // pred_check
      _
    $region19: #{tpu_custom_call.1} parent=1 // pred_check_branch
      %25 = sbr.rel (0) target = $region21
    $region20: #{tpu_custom_call.1} parent=1 // pred_region
      %s27 = ssub.s32 1024, 1024
      %28 = vsyncadd [#allocation3], %s27
      %s29 = sshll.u32 [#allocation2], 4
      %s30 = int_to_ptr.vmem [resolvable:$true] %s29
      %35 = dma.hbm_to_vmem [thread:$0]  %s4, 1024, %s30, [#allocation3], 64, 64, 4
    $region21: #{tpu_custom_call.1} parent=1 // pred_fallthru
      _
    // Predicated region
    $region22: #{tpu_custom_call.1} parent=1 // pred_check
      _
    $region23: #{tpu_custom_call.1} parent=1 // pred_check_branch
      %37 = sbr.rel (0) target = $region25
    $region24: #{tpu_custom_call.1} parent=1 // pred_region
      %s39 = ssub.s32 1024, 1024
      %40 = vsyncadd [#allocation6], %s39
      %s41 = sshll.u32 [#allocation5], 4
      %s42 = int_to_ptr.vmem [resolvable:$true] %s41
      %47 = dma.hbm_to_vmem [thread:$0]  %s5, 1024, %s42, [#allocation6], 64, 64, 4
    $region25: #{tpu_custom_call.1} parent=1 // pred_fallthru
      _
    // Predicated region
    $region26: #{tpu_custom_call.1} parent=1 // pred_check
      _
    $region27: #{tpu_custom_call.1} parent=1 // pred_check_branch
      %49 = sbr.rel (0) target = $region29
    $region28: #{tpu_custom_call.1} parent=1 // pred_region
      %s51 = ssub.s32 1024, 1024
      %52 = vsyncadd [#allocation6], %s51
      %s53 = sshll.u32 [#allocation7], 4
      %s54 = int_to_ptr.vmem [resolvable:$true] %s53
      %59 = dma.hbm_to_vmem [thread:$0]  %s6, 1024, %s54, [#allocation6], 64, 64, 4
    $region29: #{tpu_custom_call.1} parent=1 // pred_fallthru
      _
    // Predicated region
    $region30: #{tpu_custom_call.1} parent=1 // pred_check
      _
    $region31: #{tpu_custom_call.1} parent=1 // pred_check_branch
      %61 = sbr.rel (0) target = $region33
    $region32: #{tpu_custom_call.1} parent=1 // pred_region
      _
    $region33: #{tpu_custom_call.1} parent=1 // pred_fallthru
      _
    // Predicated region
    $region34: #{tpu_custom_call.1} parent=1 // pred_check
      _
    $region35: #{tpu_custom_call.1} parent=1 // pred_check_branch
      %63 = sbr.rel (0) target = $region37
    $region36: #{tpu_custom_call.1} parent=1 // pred_region
      %64 = dma.done [#allocation3], 1024
    $region37: #{tpu_custom_call.1} parent=1 // pred_fallthru
      _
    // Predicated region
    $region38: #{tpu_custom_call.1} parent=1 // pred_check
      _
    $region39: #{tpu_custom_call.1} parent=1 // pred_check_branch
      %66 = sbr.rel (0) target = $region41
    $region40: #{tpu_custom_call.1} parent=1 // pred_region
      %67 = dma.done [#allocation6], 1024
    $region41: #{tpu_custom_call.1} parent=1 // pred_fallthru
      _
    // Predicated region
    $region42: #{tpu_custom_call.1} parent=1 // pred_check
      _
    $region43: #{tpu_custom_call.1} parent=1 // pred_check_branch
      %69 = sbr.rel (0) target = $region45
    $region44: #{tpu_custom_call.1} parent=1 // pred_region
      %70 = dma.done [#allocation6], 1024
    $region45: #{tpu_custom_call.1} parent=1 // pred_fallthru
      _
    %v72 = vld [vmem:[%s7] sm:$0xff]
    %v73 = vld [vmem:[%s0] sm:$0xff]
    %v74 = vld [vmem:[%s0 + $0x8] sm:$0xff]
    %v75 = vpack.c.bf16 %v74, %v73
    %v76 = vld [vmem:[%s1] sm:$0xff]
    %v77 = vld [vmem:[%s1 + $0x8] sm:$0xff]
    %v78 = vpack.c.bf16 %v77, %v76
    %v79 = vld [vmem:[%s2] sm:$0xf]
    %v80 = vld [vmem:[%s2 + $0x4] sm:$0xf]
    %v81 = vld [vmem:[%s3] sm:$0x3]
    %vm82 = vcmask 23552
    %v84 = vsel %vm82, %v78, 0
    %vm86 = vcmask 1040384
    %vm87 = vcmask 1041408
    %v88 = vsel %vm86, 4294967295, 65535
    %v89 = vsel %vm87, %v88, 0
    %v91 = vand.u32 %v81, %v89
    %93 = vmatprep.subr.bf16.mxu0 0
    %94 = vmatpush1.bf16.msra.mxu0 %v91
    %95 = vmatprep.subr.bf16.mxu0 0
    %96 = vmatpush1.bf16.msra.mxu0 0
    %97 = vmatprep.subr.bf16.mxu0 0
    %98 = vmatpush1.bf16.msra.mxu0 0
    %99 = vmatprep.subr.bf16.mxu0 0
    %100 = vmatpush1.bf16.msra.mxu0 0
    %101 = vmatprep.subr.bf16.mxu0 0
    %102 = vmatpush1.bf16.msra.mxu0 0
    %103 = vmatprep.subr.bf16.mxu0 0
    %104 = vmatpush1.bf16.msra.mxu0 0
    %105 = vmatprep.subr.bf16.mxu0 0
    %106 = vmatpush1.bf16.msra.mxu0 0
    %107 = vmatprep.subr.bf16.mxu0 0
    %108 = vmatpush1.bf16.msra.mxu0 0
    %109 = vmatprep.subr.bf16.mxu0 0
    %110 = vmatpush1.bf16.msra.mxu0 0
    %111 = vmatprep.subr.bf16.mxu0 0
    %112 = vmatpush1.bf16.msra.mxu0 0
    %113 = vmatprep.subr.bf16.mxu0 0
    %114 = vmatpush1.bf16.msra.mxu0 0
    %115 = vmatprep.subr.bf16.mxu0 0
    %116 = vmatpush1.bf16.msra.mxu0 0
    %117 = vmatprep.subr.bf16.mxu0 0
    %118 = vmatpush1.bf16.msra.mxu0 0
    %119 = vmatprep.subr.bf16.mxu0 0
    %120 = vmatpush1.bf16.msra.mxu0 0
    %121 = vmatprep.subr.bf16.mxu0 0
    %122 = vmatpush1.bf16.msra.mxu0 0
    %123 = vmatprep.subr.bf16.mxu0 0
    %124 = vmatpush1.bf16.msra.mxu0 0
    %125 = vmatprep.mubr.bf16.mxu0 0
    %126 = vmatmul.mubr.bf16.gmra.mrb[0].mxu0 %v84
    %v127 = vpop.f32.mrb[0].mxu0
    %v128 = vadd.f32 0.0, %v127
    %v129 = vpop.f32.mrb[0].mxu0
    %v130 = vpop.f32.mrb[0].mxu0
    %v131 = vadd.f32 0.0, %v130
    %v132 = vpop.f32.mrb[0].mxu0
    %133 = vdwg.mxu0
    %v136 = vunpack.c.l.b16 %v79
    %v137 = vunpack.c.l.b16 %v80
    %v138 = vpack.c.b16 %v137, %v136
    %vm140 = vcmask 130048
    %v142 = vsel %vm140, %v75, 0
    %144 = vmatprep.subr.bf16.mxu0 0
    %145 = vmatpush1.bf16.msra.mxu0 %v138
    %146 = vmatprep.subr.bf16.mxu0 0
    %147 = vmatpush1.bf16.msra.mxu0 0
    %148 = vmatprep.subr.bf16.mxu0 0
    %149 = vmatpush1.bf16.msra.mxu0 0
    %150 = vmatprep.subr.bf16.mxu0 0
    %151 = vmatpush1.bf16.msra.mxu0 0
    %152 = vmatprep.subr.bf16.mxu0 0
    %153 = vmatpush1.bf16.msra.mxu0 0
    %154 = vmatprep.subr.bf16.mxu0 0
    %155 = vmatpush1.bf16.msra.mxu0 0
    %156 = vmatprep.subr.bf16.mxu0 0
    %157 = vmatpush1.bf16.msra.mxu0 0
    %158 = vmatprep.subr.bf16.mxu0 0
    %159 = vmatpush1.bf16.msra.mxu0 0
    %160 = vmatprep.subr.bf16.mxu0 0
    %161 = vmatpush1.bf16.msra.mxu0 0
    %162 = vmatprep.subr.bf16.mxu0 0
    %163 = vmatpush1.bf16.msra.mxu0 0
    %164 = vmatprep.subr.bf16.mxu0 0
    %165 = vmatpush1.bf16.msra.mxu0 0
    %166 = vmatprep.subr.bf16.mxu0 0
    %167 = vmatpush1.bf16.msra.mxu0 0
    %168 = vmatprep.subr.bf16.mxu0 0
    %169 = vmatpush1.bf16.msra.mxu0 0
    %170 = vmatprep.subr.bf16.mxu0 0
    %171 = vmatpush1.bf16.msra.mxu0 0
    %172 = vmatprep.subr.bf16.mxu0 0
    %173 = vmatpush1.bf16.msra.mxu0 0
    %174 = vmatprep.subr.bf16.mxu0 0
    %175 = vmatpush1.bf16.msra.mxu0 0
    %176 = vmatprep.mubr.bf16.mxu0 0
    %177 = vmatmul.mubr.bf16.gmra.mrb[0].mxu0 %v142
    %v178 = vpop.f32.mrb[0].mxu0
    %v179 = vadd.f32 %v128, %v178
    %v180 = vpop.f32.mrb[0].mxu0
    %v181 = vpop.f32.mrb[0].mxu0
    %v182 = vadd.f32 %v131, %v181
    %v183 = vpop.f32.mrb[0].mxu0
    %184 = vdwg.mxu0
    %v185 = vlaneseq
    %v186 = vshrl.u32 %v185, 7
    %v187 = vsub.s32 0, %v186
    %v188 = vrot.slane %v72, %v187
    %v189 = vadd.f32 %v179, %v188
    %v190 = vadd.f32 %v182, %v188
    %v191 = vmax.f32 %v189, 0.0
    %v192 = vmax.f32 %v190, 0.0
    %v193 = vadd.f32 %v191, %v192
    %v194 = vrot.slane %v193, 4
    %v195 = vadd.f32 %v193, %v194
    %v196 = vrot.slane %v195, 2
    %v197 = vadd.f32 %v195, %v196
    %v198 = vrot.slane %v197, 1
    %v199 = vadd.f32 %v197, %v198
    %v200 = vmul.f32 %v191, %v191
    %v201 = vmul.f32 %v192, %v192
    %v202 = vadd.f32 %v200, %v201
    %v203 = vrot.slane %v202, 4
    %v204 = vadd.f32 %v202, %v203
    %v205 = vrot.slane %v204, 2
    %v206 = vadd.f32 %v204, %v205
    %v207 = vrot.slane %v206, 1
    %v208 = vadd.f32 %v206, %v207
    %v209 = vmul.f32 %v199, 0.0625
    %v210 = vmul.f32 %v208, 0.0625
    %v211 = vmul.f32 %v209, %v209
    %v212 = vsub.f32 %v210, %v211
    %v213 = vadd.f32 %v212, 1e-05
    %v214 = vrsqrt.pop %v213
    %v215 = vmul.f32 %v72, %v214
    %v216 = vmul.f32 %v209, %v215
    %v218 = vrot.slane %v216, 7
    %v220 = vsub.f32 %v72, %v218
    %v221 = vlaneseq
    %v222 = vshrl.u32 %v221, 7
    %v223 = vsub.s32 1, %v222
    %v224 = vrot.slane %v215, %v223
    %v225 = vmul.f32 %v191, %v224
    %v226 = vmul.f32 %v192, %v224
    %v227 = vlaneseq
    %v228 = vshrl.u32 %v227, 7
    %v229 = vsub.s32 2, %v228
    %v230 = vrot.slane %v220, %v229
    %v231 = vadd.f32 %v225, %v230
    %v232 = vadd.f32 %v226, %v230
    %v233 = vpack.c.bf16 %v232, %v231
    %v234 = vld [vmem:[#allocation2] sm:$0xf]
    %v235 = vld [vmem:[#allocation2 + $0x4] sm:$0xf]
    %v236 = vld [vmem:[#allocation2 + $0x8] sm:$0xf]
    %v237 = vld [vmem:[#allocation2 + $0xc] sm:$0xf]
    %v238 = vld [vmem:[#allocation2 + $0x10] sm:$0xf]
    %v239 = vld [vmem:[#allocation2 + $0x14] sm:$0xf]
    %v240 = vld [vmem:[#allocation2 + $0x18] sm:$0xf]
    %v241 = vld [vmem:[#allocation2 + $0x1c] sm:$0xf]
    %v242 = vld [vmem:[#allocation2 + $0x20] sm:$0xf]
    %v243 = vld [vmem:[#allocation2 + $0x24] sm:$0xf]
    %v244 = vld [vmem:[#allocation2 + $0x28] sm:$0xf]
    %v245 = vld [vmem:[#allocation2 + $0x2c] sm:$0xf]
    %v246 = vld [vmem:[#allocation2 + $0x30] sm:$0xf]
    %v247 = vld [vmem:[#allocation2 + $0x34] sm:$0xf]
    %v248 = vld [vmem:[#allocation2 + $0x38] sm:$0xf]
    %v249 = vld [vmem:[#allocation2 + $0x3c] sm:$0xf]
    %v250 = vlaneseq
    %v251 = vshrl.u32 %v250, 7
    %v252 = vsub.s32 3, %v251
    %v253 = vrot.slane %v72, %v252
    %v270 = vunpack.c.l.b16 %v234
    %v271 = vunpack.c.l.b16 %v235
    %v272 = vunpack.c.l.b16 %v236
    %v273 = vunpack.c.l.b16 %v237
    %v274 = vunpack.c.l.b16 %v238
    %v275 = vunpack.c.l.b16 %v239
    %v276 = vunpack.c.l.b16 %v240
    %v277 = vunpack.c.l.b16 %v241
    %v278 = vunpack.c.l.b16 %v242
    %v279 = vunpack.c.l.b16 %v243
    %v280 = vunpack.c.l.b16 %v244
    %v281 = vunpack.c.l.b16 %v245
    %v282 = vunpack.c.l.b16 %v246
    %v283 = vunpack.c.l.b16 %v247
    %v284 = vunpack.c.l.b16 %v248
    %v285 = vunpack.c.l.b16 %v249
    %v286 = vpack.c.b16 %v271, %v270
    %v287 = vpack.c.b16 %v273, %v272
    %v288 = vpack.c.b16 %v275, %v274
    %v289 = vpack.c.b16 %v277, %v276
    %v290 = vpack.c.b16 %v279, %v278
    %v291 = vpack.c.b16 %v281, %v280
    %v292 = vpack.c.b16 %v283, %v282
    %v293 = vpack.c.b16 %v285, %v284
    %302 = vmatprep.subr.bf16.mxu0 0
    %303 = vmatpush1.bf16.msra.mxu0 %v286
    %304 = vmatprep.subr.bf16.mxu0 0
    %305 = vmatpush1.bf16.msra.mxu0 %v287
    %306 = vmatprep.subr.bf16.mxu0 0
    %307 = vmatpush1.bf16.msra.mxu0 %v288
    %308 = vmatprep.subr.bf16.mxu0 0
    %309 = vmatpush1.bf16.msra.mxu0 %v289
    %310 = vmatprep.subr.bf16.mxu0 0
    %311 = vmatpush1.bf16.msra.mxu0 %v290
    %312 = vmatprep.subr.bf16.mxu0 0
    %313 = vmatpush1.bf16.msra.mxu0 %v291
    %314 = vmatprep.subr.bf16.mxu0 0
    %315 = vmatpush1.bf16.msra.mxu0 %v292
    %316 = vmatprep.subr.bf16.mxu0 0
    %317 = vmatpush1.bf16.msra.mxu0 %v293
    %318 = vmatprep.subr.bf16.mxu0 0
    %319 = vmatpush1.bf16.msra.mxu0 0
    %320 = vmatprep.subr.bf16.mxu0 0
    %321 = vmatpush1.bf16.msra.mxu0 0
    %322 = vmatprep.subr.bf16.mxu0 0
    %323 = vmatpush1.bf16.msra.mxu0 0
    %324 = vmatprep.subr.bf16.mxu0 0
    %325 = vmatpush1.bf16.msra.mxu0 0
    %326 = vmatprep.subr.bf16.mxu0 0
    %327 = vmatpush1.bf16.msra.mxu0 0
    %328 = vmatprep.subr.bf16.mxu0 0
    %329 = vmatpush1.bf16.msra.mxu0 0
    %330 = vmatprep.subr.bf16.mxu0 0
    %331 = vmatpush1.bf16.msra.mxu0 0
    %332 = vmatprep.subr.bf16.mxu0 0
    %333 = vmatpush1.bf16.msra.mxu0 0
    %334 = vmatprep.mubr.bf16.mxu0 0
    %335 = vmatmul.mubr.bf16.gmra.mrb[0].mxu0 %v233
    %v336 = vpop.f32.mrb[0].mxu0
    %v337 = vadd.f32 %v253, %v336
    %v338 = vpop.f32.mrb[0].mxu0
    %v339 = vpop.f32.mrb[0].mxu0
    %v340 = vadd.f32 %v253, %v339
    %v341 = vpop.f32.mrb[0].mxu0
    %342 = vdwg.mxu0
    %v343 = vmax.f32 %v337, 0.0
    %v344 = vmax.f32 %v340, 0.0
    %v345 = vadd.f32 %v343, %v344
    %v346 = vrot.slane %v345, 4
    %v347 = vadd.f32 %v345, %v346
    %v348 = vrot.slane %v347, 2
    %v349 = vadd.f32 %v347, %v348
    %v350 = vrot.slane %v349, 1
    %v351 = vadd.f32 %v349, %v350
    %v352 = vmul.f32 %v343, %v343
    %v353 = vmul.f32 %v344, %v344
    %v354 = vadd.f32 %v352, %v353
    %v355 = vrot.slane %v354, 4
    %v356 = vadd.f32 %v354, %v355
    %v357 = vrot.slane %v356, 2
    %v358 = vadd.f32 %v356, %v357
    %v359 = vrot.slane %v358, 1
    %v360 = vadd.f32 %v358, %v359
    %v361 = vmul.f32 %v351, 0.0625
    %v362 = vmul.f32 %v360, 0.0625
    %v363 = vmul.f32 %v361, %v361
    %v364 = vsub.f32 %v362, %v363
    %v365 = vadd.f32 %v364, 1e-05
    %v366 = vrsqrt.pop %v365
    %v367 = vmul.f32 %v72, %v366
    %v368 = vmul.f32 %v361, %v367
    %v370 = vrot.slane %v368, 7
    %v372 = vsub.f32 %v72, %v370
    %v373 = vlaneseq
    %v374 = vshrl.u32 %v373, 7
    %v375 = vsub.s32 4, %v374
    %v376 = vrot.slane %v367, %v375
    %v377 = vmul.f32 %v343, %v376
    %v378 = vmul.f32 %v344, %v376
    %v379 = vlaneseq
    %v380 = vshrl.u32 %v379, 7
    %v381 = vsub.s32 5, %v380
    %v382 = vrot.slane %v372, %v381
    %v383 = vadd.f32 %v377, %v382
    %v384 = vadd.f32 %v378, %v382
    %v385 = vpack.c.bf16 %v384, %v383
    %v386 = vld [vmem:[#allocation5] sm:$0xf]
    %v387 = vld [vmem:[#allocation5 + $0x4] sm:$0xf]
    %v388 = vld [vmem:[#allocation5 + $0x8] sm:$0xf]
    %v389 = vld [vmem:[#allocation5 + $0xc] sm:$0xf]
    %v390 = vld [vmem:[#allocation5 + $0x10] sm:$0xf]
    %v391 = vld [vmem:[#allocation5 + $0x14] sm:$0xf]
    %v392 = vld [vmem:[#allocation5 + $0x18] sm:$0xf]
    %v393 = vld [vmem:[#allocation5 + $0x1c] sm:$0xf]
    %v394 = vld [vmem:[#allocation5 + $0x20] sm:$0xf]
    %v395 = vld [vmem:[#allocation5 + $0x24] sm:$0xf]
    %v396 = vld [vmem:[#allocation5 + $0x28] sm:$0xf]
    %v397 = vld [vmem:[#allocation5 + $0x2c] sm:$0xf]
    %v398 = vld [vmem:[#allocation5 + $0x30] sm:$0xf]
    %v399 = vld [vmem:[#allocation5 + $0x34] sm:$0xf]
    %v400 = vld [vmem:[#allocation5 + $0x38] sm:$0xf]
    %v401 = vld [vmem:[#allocation5 + $0x3c] sm:$0xf]
    %v402 = vlaneseq
    %v403 = vshrl.u32 %v402, 7
    %v404 = vsub.s32 6, %v403
    %v405 = vrot.slane %v72, %v404
    %v422 = vunpack.c.l.b16 %v386
    %v423 = vunpack.c.l.b16 %v387
    %v424 = vunpack.c.l.b16 %v388
    %v425 = vunpack.c.l.b16 %v389
    %v426 = vunpack.c.l.b16 %v390
    %v427 = vunpack.c.l.b16 %v391
    %v428 = vunpack.c.l.b16 %v392
    %v429 = vunpack.c.l.b16 %v393
    %v430 = vunpack.c.l.b16 %v394
    %v431 = vunpack.c.l.b16 %v395
    %v432 = vunpack.c.l.b16 %v396
    %v433 = vunpack.c.l.b16 %v397
    %v434 = vunpack.c.l.b16 %v398
    %v435 = vunpack.c.l.b16 %v399
    %v436 = vunpack.c.l.b16 %v400
    %v437 = vunpack.c.l.b16 %v401
    %v438 = vpack.c.b16 %v423, %v422
    %v439 = vpack.c.b16 %v425, %v424
    %v440 = vpack.c.b16 %v427, %v426
    %v441 = vpack.c.b16 %v429, %v428
    %v442 = vpack.c.b16 %v431, %v430
    %v443 = vpack.c.b16 %v433, %v432
    %v444 = vpack.c.b16 %v435, %v434
    %v445 = vpack.c.b16 %v437, %v436
    %454 = vmatprep.subr.bf16.mxu0 0
    %455 = vmatpush1.bf16.msra.mxu0 %v438
    %456 = vmatprep.subr.bf16.mxu0 0
    %457 = vmatpush1.bf16.msra.mxu0 %v439
    %458 = vmatprep.subr.bf16.mxu0 0
    %459 = vmatpush1.bf16.msra.mxu0 %v440
    %460 = vmatprep.subr.bf16.mxu0 0
    %461 = vmatpush1.bf16.msra.mxu0 %v441
    %462 = vmatprep.subr.bf16.mxu0 0
    %463 = vmatpush1.bf16.msra.mxu0 %v442
    %464 = vmatprep.subr.bf16.mxu0 0
    %465 = vmatpush1.bf16.msra.mxu0 %v443
    %466 = vmatprep.subr.bf16.mxu0 0
    %467 = vmatpush1.bf16.msra.mxu0 %v444
    %468 = vmatprep.subr.bf16.mxu0 0
    %469 = vmatpush1.bf16.msra.mxu0 %v445
    %470 = vmatprep.subr.bf16.mxu0 0
    %471 = vmatpush1.bf16.msra.mxu0 0
    %472 = vmatprep.subr.bf16.mxu0 0
    %473 = vmatpush1.bf16.msra.mxu0 0
    %474 = vmatprep.subr.bf16.mxu0 0
    %475 = vmatpush1.bf16.msra.mxu0 0
    %476 = vmatprep.subr.bf16.mxu0 0
    %477 = vmatpush1.bf16.msra.mxu0 0
    %478 = vmatprep.subr.bf16.mxu0 0
    %479 = vmatpush1.bf16.msra.mxu0 0
    %480 = vmatprep.subr.bf16.mxu0 0
    %481 = vmatpush1.bf16.msra.mxu0 0
    %482 = vmatprep.subr.bf16.mxu0 0
    %483 = vmatpush1.bf16.msra.mxu0 0
    %484 = vmatprep.subr.bf16.mxu0 0
    %485 = vmatpush1.bf16.msra.mxu0 0
    %486 = vmatprep.mubr.bf16.mxu0 0
    %487 = vmatmul.mubr.bf16.gmra.mrb[0].mxu0 %v385
    %v488 = vpop.f32.mrb[0].mxu0
    %v489 = vadd.f32 %v405, %v488
    %v490 = vpop.f32.mrb[0].mxu0
    %v491 = vpop.f32.mrb[0].mxu0
    %v492 = vadd.f32 %v405, %v491
    %v493 = vpop.f32.mrb[0].mxu0
    %494 = vdwg.mxu0
    %v495 = vmax.f32 %v489, 0.0
    %v496 = vmax.f32 %v492, 0.0
    %v497 = vpack.c.bf16 %v496, %v495
    %v498 = vld [vmem:[#allocation7] sm:$0xf]
    %v499 = vld [vmem:[#allocation7 + $0x4] sm:$0xf]
    %v500 = vld [vmem:[#allocation7 + $0x8] sm:$0xf]
    %v501 = vld [vmem:[#allocation7 + $0xc] sm:$0xf]
    %v502 = vld [vmem:[#allocation7 + $0x10] sm:$0xf]
    %v503 = vld [vmem:[#allocation7 + $0x14] sm:$0xf]
    %v504 = vld [vmem:[#allocation7 + $0x18] sm:$0xf]
    %v505 = vld [vmem:[#allocation7 + $0x1c] sm:$0xf]
    %v506 = vld [vmem:[#allocation7 + $0x20] sm:$0xf]
    %v507 = vld [vmem:[#allocation7 + $0x24] sm:$0xf]
    %v508 = vld [vmem:[#allocation7 + $0x28] sm:$0xf]
    %v509 = vld [vmem:[#allocation7 + $0x2c] sm:$0xf]
    %v510 = vld [vmem:[#allocation7 + $0x30] sm:$0xf]
    %v511 = vld [vmem:[#allocation7 + $0x34] sm:$0xf]
    %v512 = vld [vmem:[#allocation7 + $0x38] sm:$0xf]
    %v513 = vld [vmem:[#allocation7 + $0x3c] sm:$0xf]
    %v514 = vlaneseq
    %v515 = vshrl.u32 %v514, 7
    %v516 = vsub.s32 7, %v515
    %v517 = vrot.slane %v72, %v516
    %v534 = vunpack.c.l.b16 %v498
    %v535 = vunpack.c.l.b16 %v499
    %v536 = vunpack.c.l.b16 %v500
    %v537 = vunpack.c.l.b16 %v501
    %v538 = vunpack.c.l.b16 %v502
    %v539 = vunpack.c.l.b16 %v503
    %v540 = vunpack.c.l.b16 %v504
    %v541 = vunpack.c.l.b16 %v505
    %v542 = vunpack.c.l.b16 %v506
    %v543 = vunpack.c.l.b16 %v507
    %v544 = vunpack.c.l.b16 %v508
    %v545 = vunpack.c.l.b16 %v509
    %v546 = vunpack.c.l.b16 %v510
    %v547 = vunpack.c.l.b16 %v511
    %v548 = vunpack.c.l.b16 %v512
    %v549 = vunpack.c.l.b16 %v513
    %v550 = vpack.c.b16 %v535, %v534
    %v551 = vpack.c.b16 %v537, %v536
    %v552 = vpack.c.b16 %v539, %v538
    %v553 = vpack.c.b16 %v541, %v540
    %v554 = vpack.c.b16 %v543, %v542
    %v555 = vpack.c.b16 %v545, %v544
    %v556 = vpack.c.b16 %v547, %v546
    %v557 = vpack.c.b16 %v549, %v548
    %566 = vmatprep.subr.bf16.mxu0 0
    %567 = vmatpush1.bf16.msra.mxu0 %v550
    %568 = vmatprep.subr.bf16.mxu0 0
    %569 = vmatpush1.bf16.msra.mxu0 %v551
    %570 = vmatprep.subr.bf16.mxu0 0
    %571 = vmatpush1.bf16.msra.mxu0 %v552
    %572 = vmatprep.subr.bf16.mxu0 0
    %573 = vmatpush1.bf16.msra.mxu0 %v553
    %574 = vmatprep.subr.bf16.mxu0 0
    %575 = vmatpush1.bf16.msra.mxu0 %v554
    %576 = vmatprep.subr.bf16.mxu0 0
    %577 = vmatpush1.bf16.msra.mxu0 %v555
    %578 = vmatprep.subr.bf16.mxu0 0
    %579 = vmatpush1.bf16.msra.mxu0 %v556
    %580 = vmatprep.subr.bf16.mxu0 0
    %581 = vmatpush1.bf16.msra.mxu0 %v557
    %582 = vmatprep.subr.bf16.mxu0 0
    %583 = vmatpush1.bf16.msra.mxu0 0
    %584 = vmatprep.subr.bf16.mxu0 0
    %585 = vmatpush1.bf16.msra.mxu0 0
    %586 = vmatprep.subr.bf16.mxu0 0
    %587 = vmatpush1.bf16.msra.mxu0 0
    %588 = vmatprep.subr.bf16.mxu0 0
    %589 = vmatpush1.bf16.msra.mxu0 0
    %590 = vmatprep.subr.bf16.mxu0 0
    %591 = vmatpush1.bf16.msra.mxu0 0
    %592 = vmatprep.subr.bf16.mxu0 0
    %593 = vmatpush1.bf16.msra.mxu0 0
    %594 = vmatprep.subr.bf16.mxu0 0
    %595 = vmatpush1.bf16.msra.mxu0 0
    %596 = vmatprep.subr.bf16.mxu0 0
    %597 = vmatpush1.bf16.msra.mxu0 0
    %598 = vmatprep.mubr.bf16.mxu0 0
    %599 = vmatmul.mubr.bf16.gmra.mrb[0].mxu0 %v497
    %v600 = vpop.f32.mrb[0].mxu0
    %v601 = vadd.f32 %v517, %v600
    %v602 = vpop.f32.mrb[0].mxu0
    %v603 = vpop.f32.mrb[0].mxu0
    %v604 = vadd.f32 %v517, %v603
    %v605 = vpop.f32.mrb[0].mxu0
    %606 = vdwg.mxu0
    %607 = vst [vmem:[#allocation8] sm:$0xff] %v601
    %608 = vst [vmem:[#allocation8 + $0x8] sm:$0xff] %v604
    // Predicated region
    $region46: #{tpu_custom_call.1} parent=1 // pred_check
      _
    $region47: #{tpu_custom_call.1} parent=1 // pred_check_branch
      %610 = sbr.rel (0) target = $region49
    $region48: #{tpu_custom_call.1} parent=1 // pred_region
      %s612 = ssub.s32 256, 256
      %613 = vsyncadd [#allocation4], %s612
      %s614 = sshll.u32 [#allocation8], 4
      %s615 = int_to_ptr.vmem [resolvable:$true] %s614
      %620 = dma.vmem_to_hbm [thread:$0]  %s615, 256, %s8, [#allocation4], 128, 128, 8
    $region49: #{tpu_custom_call.1} parent=1 // pred_fallthru
      _
    // Predicated region
    $region50: #{tpu_custom_call.1} parent=1 // pred_check
      _
    $region51: #{tpu_custom_call.1} parent=1 // pred_check_branch
      %622 = sbr.rel (0) target = $region53
    $region52: #{tpu_custom_call.1} parent=1 // pred_region
      %623 = dma.done [#allocation4], 256
    $region53: #{tpu_custom_call.1} parent=1 // pred_fallthru
      _
    %624 = vsyncpa [#allocation3], 1
    %625 = vsyncpa [#allocation6], 1
    %626 = vsyncpa [#allocation4], 1

</llo_original>
